<compile_context>
chip_gen: v7x
topology: tpu7x:2x2x1
jax: 0.10.0
libtpu: 0.0.40
codegen_flags: <defaults>
</compile_context>

<pallas_src>
import jax
import jax.numpy as jnp
from jax import lax
from jax.experimental import pallas as pl
from jax.experimental.pallas import tpu as pltpu

EPS = 1e-3  # BatchNorm2d eps=0.001


def _fused_kernel(x_ref, w1_ref, g1_ref, w2_ref, g2_ref, b2_ref, o_ref):
    """Channels-first fused block.

    x_ref : (Cin,  M)   input, M = N*H*W
    w1_ref: (Cmid, Cin) conv2d30 weight (PyTorch layout, 1x1 kernel squeezed)
    g1_ref: (Cmid, 1)   batchnorm2d20 weight (gamma)
    w2_ref: (Cout, Cmid) conv2d31 weight
    g2_ref: (Cout, 1)   batchnorm2d21 weight (gamma)
    b2_ref: (Cout, 1)   batchnorm2d21 bias  (beta)
    o_ref : (Cout, M)   output
    """
    m_size = x_ref.shape[1]
    inv_m = 1.0 / m_size  # static python float

    x = x_ref[...]

    # conv2d30 (1x1, no bias): (Cmid, Cin) @ (Cin, M) on the MXU, bf16 in / f32 acc.
    y1 = jnp.dot(
        w1_ref[...].astype(jnp.bfloat16),
        x.astype(jnp.bfloat16),
        preferred_element_type=jnp.float32,
    )

    # batchnorm2d20 statistics (training mode, biased variance over M), one pass.
    sum1 = jnp.sum(y1, axis=1, keepdims=True)
    sumsq1 = jnp.sum(y1 * y1, axis=1, keepdims=True)
    mean1 = sum1 * inv_m
    var1 = sumsq1 * inv_m - mean1 * mean1
    scale1 = g1_ref[...] * lax.rsqrt(var1 + EPS)            # (Cmid, 1)

    # Apply only BN1's scale; its shift adds a per-channel constant to conv2d31's
    # output which batchnorm2d21's mean subtraction removes exactly (conv2d31 has
    # no bias), so it is dropped.
    y1s = y1 * scale1                                        # (Cmid, M)

    # conv2d31 (1x1, no bias): (Cout, Cmid) @ (Cmid, M) on the MXU.
    y2 = jnp.dot(
        w2_ref[...].astype(jnp.bfloat16),
        y1s.astype(jnp.bfloat16),
        preferred_element_type=jnp.float32,
    )

    # batchnorm2d21, one-pass statistics.
    sum2 = jnp.sum(y2, axis=1, keepdims=True)
    sumsq2 = jnp.sum(y2 * y2, axis=1, keepdims=True)
    mean2 = sum2 * inv_m
    var2 = sumsq2 * inv_m - mean2 * mean2
    scale2 = g2_ref[...] * lax.rsqrt(var2 + EPS)             # (Cout, 1)

    o_ref[...] = (y2 - mean2) * scale2 + b2_ref[...]


def conv_bn_conv_bn(x_nchw, w1, g1, b1, w2, g2, b2):
    """Forward pass of the PyTorch block.

    x_nchw: (N, 120, H, W) float32
    w1:     (48, 120)  = conv2d30.weight[:, :, 0, 0]
    g1, b1: (48,)      = batchnorm2d20 weight/bias
    w2:     (144, 48)  = conv2d31.weight[:, :, 0, 0]
    g2, b2: (144,)     = batchnorm2d21 weight/bias
    Returns (N, 144, H, W) float32.
    """
    N, Cin, H, W = x_nchw.shape
    M = N * H * W
    Cmid = w1.shape[0]
    Cout = w2.shape[0]

    # Channels-first 2-D view: (Cin, M). For N == 1 this is a pure reshape
    # (no data movement); a transpose only reappears for N > 1.
    if N == 1:
        x_cm = x_nchw.reshape(Cin, M)
    else:
        x_cm = jnp.moveaxis(x_nchw, 1, 0).reshape(Cin, M)

    # b1 is intentionally not passed to the kernel: BN1's shift only contributes
    # a per-channel constant to conv2d31's output, which BN2's mean subtraction
    # removes exactly, so it cannot affect the forward result.
    out_cm = pl.pallas_call(
        _fused_kernel,
        out_shape=jax.ShapeDtypeStruct((Cout, M), jnp.float32),
        in_specs=[pl.BlockSpec(memory_space=pltpu.MemorySpace.VMEM)] * 6,
        out_specs=pl.BlockSpec(memory_space=pltpu.MemorySpace.VMEM),
    )(
        x_cm,
        w1,
        g1.reshape(Cmid, 1),
        w2,
        g2.reshape(Cout, 1),
        b2.reshape(Cout, 1),
    )

    if N == 1:
        return out_cm.reshape(1, Cout, H, W)
    return jnp.moveaxis(out_cm.reshape(Cout, N, H, W), 0, 1)


def _reference_forward(x, w1, g1, b1, w2, g2, b2):
    """Pure-JAX f32 reference of the PyTorch module (training-mode BN)."""
    N, Cin, H, W = x.shape
    xf = jnp.transpose(x, (0, 2, 3, 1)).reshape(-1, Cin)      # (M, Cin)
    y1 = xf @ w1.T
    m1 = y1.mean(0)
    v1 = y1.var(0)                                            # biased
    y1n = (y1 - m1) * jax.lax.rsqrt(v1 + EPS) * g1 + b1
    y2 = y1n @ w2.T
    m2 = y2.mean(0)
    v2 = y2.var(0)
    y2n = (y2 - m2) * jax.lax.rsqrt(v2 + EPS) * g2 + b2
    Cout = w2.shape[0]
    return jnp.transpose(y2n.reshape(N, H, W, Cout), (0, 3, 1, 2))


if __name__ == "__main__":
    key = jax.random.PRNGKey(0)
    k_x, k_w1, k_w2, k_g1, k_b1, k_g2, k_b2 = jax.random.split(key, 7)

    # Shapes from the PyTorch module: input (1, 120, 14, 14), 120 -> 48 -> 144.
    N, Cin, H, W = 1, 120, 14, 14
    Cmid, Cout = 48, 144

    x = jax.random.normal(k_x, (N, Cin, H, W), dtype=jnp.float32)
    # Conv weights in PyTorch (Cout, Cin) layout (1x1 kernel squeezed).
    w1 = 0.1 * jax.random.normal(k_w1, (Cmid, Cin), dtype=jnp.float32)
    w2 = 0.1 * jax.random.normal(k_w2, (Cout, Cmid), dtype=jnp.float32)
    # Non-trivial BN affine params to exercise the full path.
    g1 = 1.0 + 0.1 * jax.random.normal(k_g1, (Cmid,), dtype=jnp.float32)
    b1 = 0.1 * jax.random.normal(k_b1, (Cmid,), dtype=jnp.float32)
    g2 = 1.0 + 0.1 * jax.random.normal(k_g2, (Cout,), dtype=jnp.float32)
    b2 = 0.1 * jax.random.normal(k_b2, (Cout,), dtype=jnp.float32)

    out = conv_bn_conv_bn(x, w1, g1, b1, w2, g2, b2)
    out = jax.block_until_ready(out)
    assert out.shape == (N, Cout, H, W), out.shape

    # Self-check against the f32 reference (loose tolerance: bf16 MXU inputs).
    ref = _reference_forward(x, w1, g1, b1, w2, g2, b2)
    max_err = float(jnp.max(jnp.abs(out - ref)))
    assert max_err < 0.25, f"max abs error {max_err} too large"

    print("KERNEL_OK")
</pallas_src>

<mosaic_0001>
module attributes {stable_mosaic.version = 11 : i64} {
  func.func @_fused_kernel(%arg0: memref<120x196xf32, #tpu.memory_space<vmem>>, %arg1: memref<48x120xf32, #tpu.memory_space<vmem>>, %arg2: memref<48x1xf32, #tpu.memory_space<vmem>>, %arg3: memref<144x48xf32, #tpu.memory_space<vmem>>, %arg4: memref<144x1xf32, #tpu.memory_space<vmem>>, %arg5: memref<144x1xf32, #tpu.memory_space<vmem>>, %arg6: memref<144x196xf32, #tpu.memory_space<vmem>>) attributes {dimension_semantics = [], scalar_prefetch = 0 : i64, scratch_operands = 0 : i64, tpu.core_type = #tpu.core_type<tc>} {
    %c0 = arith.constant 0 : index
    %c0_0 = arith.constant 0 : index
    %0 = vector.load %arg0[%c0, %c0_0] : memref<120x196xf32, #tpu.memory_space<vmem>>, vector<120x196xf32>
    %c0_1 = arith.constant 0 : index
    %c0_2 = arith.constant 0 : index
    %1 = vector.load %arg1[%c0_1, %c0_2] : memref<48x120xf32, #tpu.memory_space<vmem>>, vector<48x120xf32>
    %2 = arith.truncf %1 : vector<48x120xf32> to vector<48x120xbf16>
    %3 = arith.truncf %0 : vector<120x196xf32> to vector<120x196xbf16>
    %cst = arith.constant dense<0.000000e+00> : vector<48x196xf32>
    %4 = tpu.matmul %2, %3, %cst {dimension_numbers = #tpu.dot_dimension_numbers<[1], [0], [0], [1], [0, 0, 1, 1], [], []>} : vector<48x120xbf16>, vector<120x196xbf16>, vector<48x196xf32> -> vector<48x196xf32>
    %cst_3 = arith.constant dense<0.000000e+00> : vector<48xf32>
    %5 = vector.multi_reduction <add>, %4, %cst_3 [1] : vector<48x196xf32> to vector<48xf32>
    %6 = vector.shape_cast %5 : vector<48xf32> to vector<48x1xf32>
    %7 = arith.mulf %4, %4 : vector<48x196xf32>
    %cst_4 = arith.constant dense<0.000000e+00> : vector<48xf32>
    %8 = vector.multi_reduction <add>, %7, %cst_4 [1] : vector<48x196xf32> to vector<48xf32>
    %9 = vector.shape_cast %8 : vector<48xf32> to vector<48x1xf32>
    %cst_5 = arith.constant 0.00510204071 : f32
    %10 = vector.broadcast %cst_5 : f32 to vector<48x1xf32>
    %11 = arith.mulf %6, %10 : vector<48x1xf32>
    %cst_6 = arith.constant 0.00510204071 : f32
    %12 = vector.broadcast %cst_6 : f32 to vector<48x1xf32>
    %13 = arith.mulf %9, %12 : vector<48x1xf32>
    %14 = arith.mulf %11, %11 : vector<48x1xf32>
    %15 = arith.subf %13, %14 : vector<48x1xf32>
    %c0_7 = arith.constant 0 : index
    %c0_8 = arith.constant 0 : index
    %16 = vector.load %arg2[%c0_7, %c0_8] : memref<48x1xf32, #tpu.memory_space<vmem>>, vector<48x1xf32>
    %cst_9 = arith.constant 1.000000e-03 : f32
    %17 = vector.broadcast %cst_9 : f32 to vector<48x1xf32>
    %18 = arith.addf %15, %17 : vector<48x1xf32>
    %19 = math.rsqrt %18 : vector<48x1xf32>
    %20 = arith.mulf %16, %19 : vector<48x1xf32>
    %21 = vector.broadcast %20 : vector<48x1xf32> to vector<48x196xf32>
    %22 = arith.mulf %4, %21 : vector<48x196xf32>
    %c0_10 = arith.constant 0 : index
    %c0_11 = arith.constant 0 : index
    %23 = vector.load %arg3[%c0_10, %c0_11] : memref<144x48xf32, #tpu.memory_space<vmem>>, vector<144x48xf32>
    %24 = arith.truncf %23 : vector<144x48xf32> to vector<144x48xbf16>
    %25 = arith.truncf %22 : vector<48x196xf32> to vector<48x196xbf16>
    %cst_12 = arith.constant dense<0.000000e+00> : vector<144x196xf32>
    %26 = tpu.matmul %24, %25, %cst_12 {dimension_numbers = #tpu.dot_dimension_numbers<[1], [0], [0], [1], [0, 0, 1, 1], [], []>} : vector<144x48xbf16>, vector<48x196xbf16>, vector<144x196xf32> -> vector<144x196xf32>
    %cst_13 = arith.constant dense<0.000000e+00> : vector<144xf32>
    %27 = vector.multi_reduction <add>, %26, %cst_13 [1] : vector<144x196xf32> to vector<144xf32>
    %28 = vector.shape_cast %27 : vector<144xf32> to vector<144x1xf32>
    %29 = arith.mulf %26, %26 : vector<144x196xf32>
    %cst_14 = arith.constant dense<0.000000e+00> : vector<144xf32>
    %30 = vector.multi_reduction <add>, %29, %cst_14 [1] : vector<144x196xf32> to vector<144xf32>
    %31 = vector.shape_cast %30 : vector<144xf32> to vector<144x1xf32>
    %cst_15 = arith.constant 0.00510204071 : f32
    %32 = vector.broadcast %cst_15 : f32 to vector<144x1xf32>
    %33 = arith.mulf %28, %32 : vector<144x1xf32>
    %cst_16 = arith.constant 0.00510204071 : f32
    %34 = vector.broadcast %cst_16 : f32 to vector<144x1xf32>
    %35 = arith.mulf %31, %34 : vector<144x1xf32>
    %36 = arith.mulf %33, %33 : vector<144x1xf32>
    %37 = arith.subf %35, %36 : vector<144x1xf32>
    %c0_17 = arith.constant 0 : index
    %c0_18 = arith.constant 0 : index
    %38 = vector.load %arg4[%c0_17, %c0_18] : memref<144x1xf32, #tpu.memory_space<vmem>>, vector<144x1xf32>
    %cst_19 = arith.constant 1.000000e-03 : f32
    %39 = vector.broadcast %cst_19 : f32 to vector<144x1xf32>
    %40 = arith.addf %37, %39 : vector<144x1xf32>
    %41 = math.rsqrt %40 : vector<144x1xf32>
    %42 = arith.mulf %38, %41 : vector<144x1xf32>
    %43 = vector.broadcast %33 : vector<144x1xf32> to vector<144x196xf32>
    %44 = arith.subf %26, %43 : vector<144x196xf32>
    %45 = vector.broadcast %42 : vector<144x1xf32> to vector<144x196xf32>
    %46 = arith.mulf %44, %45 : vector<144x196xf32>
    %c0_20 = arith.constant 0 : index
    %c0_21 = arith.constant 0 : index
    %47 = vector.load %arg5[%c0_20, %c0_21] : memref<144x1xf32, #tpu.memory_space<vmem>>, vector<144x1xf32>
    %48 = vector.broadcast %47 : vector<144x1xf32> to vector<144x196xf32>
    %49 = arith.addf %46, %48 : vector<144x196xf32>
    %c0_22 = arith.constant 0 : index
    %c0_23 = arith.constant 0 : index
    %50 = vector.load %arg6[%c0_22, %c0_23] : memref<144x196xf32, #tpu.memory_space<vmem>>, vector<144x196xf32>
    tpu.vector_store %arg6[%c0_22, %c0_23], %49 {strides = array<i32>} : memref<144x196xf32, #tpu.memory_space<vmem>>, vector<144x196xf32>,
    return
  }
}

</mosaic_0001>

<llo_original>
// kernel: tpu_custom_call.1
$region0: #{tpu_custom_call.1}
  #allocation0 [shape = 'u32[]', space=smem, size = 0x4, offset = 0x4, fixed_abs, tag = 'smem constant byte address 0x4 - core index']
  #allocation1 [shape = 'u32[144,128]{1,0:T(1,128)}', space=vmem, size = 0x12000, scoped, tag = 'internal scratch']
  %s0 = inlined_call_operand.vmem [shape: f32[120,196], index: 0, kind: input, shape index: {}]
  %s1 = inlined_call_operand.vmem [shape: f32[48,120], index: 1, kind: input, shape index: {}]
  %s2 = inlined_call_operand.vmem [shape: f32[48,1], index: 2, kind: input, shape index: {}]
  %s3 = inlined_call_operand.vmem [shape: f32[144,48], index: 3, kind: input, shape index: {}]
  %s4 = inlined_call_operand.vmem [shape: f32[144,1], index: 4, kind: input, shape index: {}]
  %s5 = inlined_call_operand.vmem [shape: f32[144,1], index: 5, kind: input, shape index: {}]
  %s6 = inlined_call_operand.hbm [shape: f32[144,196], index: 6, kind: output, shape index: {}]
  %s7 = sld [smem:[#allocation0]]
  $region34: #{tpu_custom_call.1} parent=0
    _
  %s9 = ssub.s32 1, %s7
  %s10 = scalar_select 0, %s9, %s7
  $region1: #{tpu_custom_call.1} parent=0
    #allocation2 [shape = 'u8[147456]{0}', space=vmem, size = 0x24000, scoped, tag = 'output window, operand 0, single buffered']
    #allocation3 [shape = 's32[1]{0}', space=sflag, size = 0x4, scoped, tag = 'scoped memory for tpu_custom_call.1']
    %11 = vsyncpa [#allocation3], 0
    // Predicated region
    $region2: #{tpu_custom_call.1} parent=1 // pred_check
      _
    $region3: #{tpu_custom_call.1} parent=1 // pred_check_branch
      %13 = sbr.rel (0) target = $region5
    $region4: #{tpu_custom_call.1} parent=1 // pred_region
      _
    $region5: #{tpu_custom_call.1} parent=1 // pred_fallthru
      _
    // Predicated region
    $region6: #{tpu_custom_call.1} parent=1 // pred_check
      _
    $region7: #{tpu_custom_call.1} parent=1 // pred_check_branch
      %15 = sbr.rel (0) target = $region9
    $region8: #{tpu_custom_call.1} parent=1 // pred_region
      _
    $region9: #{tpu_custom_call.1} parent=1 // pred_fallthru
      _
    // Predicated region
    $region10: #{tpu_custom_call.1} parent=1 // pred_check
      _
    $region11: #{tpu_custom_call.1} parent=1 // pred_check_branch
      %17 = sbr.rel (0) target = $region13
    $region12: #{tpu_custom_call.1} parent=1 // pred_region
      _
    $region13: #{tpu_custom_call.1} parent=1 // pred_fallthru
      _
    // Predicated region
    $region14: #{tpu_custom_call.1} parent=1 // pred_check
      _
    $region15: #{tpu_custom_call.1} parent=1 // pred_check_branch
      %19 = sbr.rel (0) target = $region17
    $region16: #{tpu_custom_call.1} parent=1 // pred_region
      _
    $region17: #{tpu_custom_call.1} parent=1 // pred_fallthru
      _
    // Predicated region
    $region18: #{tpu_custom_call.1} parent=1 // pred_check
      _
    $region19: #{tpu_custom_call.1} parent=1 // pred_check_branch
      %21 = sbr.rel (0) target = $region21
    $region20: #{tpu_custom_call.1} parent=1 // pred_region
      _
    $region21: #{tpu_custom_call.1} parent=1 // pred_fallthru
      _
    // Predicated region
    $region22: #{tpu_custom_call.1} parent=1 // pred_check
      _
    $region23: #{tpu_custom_call.1} parent=1 // pred_check_branch
      %23 = sbr.rel (0) target = $region25
    $region24: #{tpu_custom_call.1} parent=1 // pred_region
      _
    $region25: #{tpu_custom_call.1} parent=1 // pred_fallthru
      _
    %v25 = vld [vmem:[%s0] sm:$0xff]
    %v26 = vld [vmem:[%s0 + $0x8] sm:$0xff]
    %v27 = vld [vmem:[%s0 + $0x10] sm:$0xff]
    %v28 = vld [vmem:[%s0 + $0x18] sm:$0xff]
    %v29 = vld [vmem:[%s0 + $0x20] sm:$0xff]
    %v30 = vld [vmem:[%s0 + $0x28] sm:$0xff]
    %v31 = vld [vmem:[%s0 + $0x30] sm:$0xff]
    %v32 = vld [vmem:[%s0 + $0x38] sm:$0xff]
    %v33 = vld [vmem:[%s0 + $0x40] sm:$0xff]
    %v34 = vld [vmem:[%s0 + $0x48] sm:$0xff]
    %v35 = vld [vmem:[%s0 + $0x50] sm:$0xff]
    %v36 = vld [vmem:[%s0 + $0x58] sm:$0xff]
    %v37 = vld [vmem:[%s0 + $0x60] sm:$0xff]
    %v38 = vld [vmem:[%s0 + $0x68] sm:$0xff]
    %v39 = vld [vmem:[%s0 + $0x70] sm:$0xff]
    %v40 = vld [vmem:[%s0 + $0x78] sm:$0xff]
    %v41 = vld [vmem:[%s0 + $0x80] sm:$0xff]
    %v42 = vld [vmem:[%s0 + $0x88] sm:$0xff]
    %v43 = vld [vmem:[%s0 + $0x90] sm:$0xff]
    %v44 = vld [vmem:[%s0 + $0x98] sm:$0xff]
    %v45 = vld [vmem:[%s0 + $0xa0] sm:$0xff]
    %v46 = vld [vmem:[%s0 + $0xa8] sm:$0xff]
    %v47 = vld [vmem:[%s0 + $0xb0] sm:$0xff]
    %v48 = vld [vmem:[%s0 + $0xb8] sm:$0xff]
    %v49 = vld [vmem:[%s0 + $0xc0] sm:$0xff]
    %v50 = vld [vmem:[%s0 + $0xc8] sm:$0xff]
    %v51 = vld [vmem:[%s0 + $0xd0] sm:$0xff]
    %v52 = vld [vmem:[%s0 + $0xd8] sm:$0xff]
    %v53 = vld [vmem:[%s0 + $0xe0] sm:$0xff]
    %v54 = vld [vmem:[%s0 + $0xe8] sm:$0xff]
    %v55 = vld [vmem:[%s1] sm:$0xff]
    %v56 = vld [vmem:[%s1 + $0x8] sm:$0xff]
    %v57 = vld [vmem:[%s1 + $0x10] sm:$0xff]
    %v58 = vld [vmem:[%s1 + $0x18] sm:$0xff]
    %v59 = vld [vmem:[%s1 + $0x20] sm:$0xff]
    %v60 = vld [vmem:[%s1 + $0x28] sm:$0xff]
    %v61 = vpack.c.bf16 %v56, %v55
    %v62 = vpack.c.bf16 %v58, %v57
    %v63 = vpack.c.bf16 %v60, %v59
    %v64 = vpack.c.bf16 %v27, %v25
    %v65 = vpack.c.bf16 %v28, %v26
    %v66 = vpack.c.bf16 %v31, %v29
    %v67 = vpack.c.bf16 %v32, %v30
    %v68 = vpack.c.bf16 %v35, %v33
    %v69 = vpack.c.bf16 %v36, %v34
    %v70 = vpack.c.bf16 %v39, %v37
    %v71 = vpack.c.bf16 %v40, %v38
    %v72 = vpack.c.bf16 %v43, %v41
    %v73 = vpack.c.bf16 %v44, %v42
    %v74 = vpack.c.bf16 %v47, %v45
    %v75 = vpack.c.bf16 %v48, %v46
    %v76 = vpack.c.bf16 %v51, %v49
    %v77 = vpack.c.bf16 %v52, %v50
    %v78 = vpack.c.bf16 %v53, %v53
    %v79 = vpack.c.bf16 %v54, %v54
    %vm80 = vcmask 982016
    %v82 = vsel %vm80, %v61, 0
    %v85 = vsel %vm80, %v62, 0
    %v88 = vsel %vm80, %v63, 0
    %vm90 = vcmask 1043456
    %v92 = vsel %vm90, %v78, 0
    %v95 = vsel %vm90, %v79, 0
    %97 = vmatprep.subr.bf16.mxu0 %v65
    %98 = vmatpush1.bf16.msra.mxu0 %v64
    %99 = vmatprep.subr.bf16.mxu0 %v67
    %100 = vmatpush1.bf16.msra.mxu0 %v66
    %101 = vmatprep.subr.bf16.mxu0 %v69
    %102 = vmatpush1.bf16.msra.mxu0 %v68
    %103 = vmatprep.subr.bf16.mxu0 %v71
    %104 = vmatpush1.bf16.msra.mxu0 %v70
    %105 = vmatprep.subr.bf16.mxu0 %v73
    %106 = vmatpush1.bf16.msra.mxu0 %v72
    %107 = vmatprep.subr.bf16.mxu0 %v75
    %108 = vmatpush1.bf16.msra.mxu0 %v74
    %109 = vmatprep.subr.bf16.mxu0 %v77
    %110 = vmatpush1.bf16.msra.mxu0 %v76
    %111 = vmatprep.subr.bf16.mxu0 %v95
    %112 = vmatpush1.bf16.msra.mxu0 %v92
    %113 = vmatprep.subr.bf16.mxu0 0
    %114 = vmatpush1.bf16.msra.mxu0 0
    %115 = vmatprep.subr.bf16.mxu0 0
    %116 = vmatpush1.bf16.msra.mxu0 0
    %117 = vmatprep.subr.bf16.mxu0 0
    %118 = vmatpush1.bf16.msra.mxu0 0
    %119 = vmatprep.subr.bf16.mxu0 0
    %120 = vmatpush1.bf16.msra.mxu0 0
    %121 = vmatprep.subr.bf16.mxu0 0
    %122 = vmatpush1.bf16.msra.mxu0 0
    %123 = vmatprep.subr.bf16.mxu0 0
    %124 = vmatpush1.bf16.msra.mxu0 0
    %125 = vmatprep.subr.bf16.mxu0 0
    %126 = vmatpush1.bf16.msra.mxu0 0
    %127 = vmatprep.subr.bf16.mxu0 0
    %128 = vmatpush1.bf16.msra.mxu0 0
    %129 = vmatprep.mubr.bf16.mxu0 0
    %130 = vmatmul.mubr.bf16.gmra.mrb[0].mxu0 %v82
    %v131 = vpop.f32.mrb[0].mxu0
    %v132 = vadd.f32 0.0, %v131
    %v133 = vpop.f32.mrb[0].mxu0
    %v134 = vadd.f32 0.0, %v133
    %v135 = vpop.f32.mrb[0].mxu0
    %v136 = vadd.f32 0.0, %v135
    %v137 = vpop.f32.mrb[0].mxu0
    %v138 = vadd.f32 0.0, %v137
    %139 = vmatprep.mubr.bf16.mxu0 0
    %140 = vmatmul.mubr.bf16.gmra.mrb[0].mxu0 %v85
    %v141 = vpop.f32.mrb[0].mxu0
    %v142 = vadd.f32 0.0, %v141
    %v143 = vpop.f32.mrb[0].mxu0
    %v144 = vadd.f32 0.0, %v143
    %v145 = vpop.f32.mrb[0].mxu0
    %v146 = vadd.f32 0.0, %v145
    %v147 = vpop.f32.mrb[0].mxu0
    %v148 = vadd.f32 0.0, %v147
    %149 = vmatprep.mubr.bf16.mxu0 0
    %150 = vmatmul.mubr.bf16.gmra.mrb[0].mxu0 %v88
    %v151 = vpop.f32.mrb[0].mxu0
    %v152 = vadd.f32 0.0, %v151
    %v153 = vpop.f32.mrb[0].mxu0
    %v154 = vadd.f32 0.0, %v153
    %v155 = vpop.f32.mrb[0].mxu0
    %v156 = vadd.f32 0.0, %v155
    %v157 = vpop.f32.mrb[0].mxu0
    %v158 = vadd.f32 0.0, %v157
    %159 = vdwg.mxu0
    %vm160 = vcmask 556032
    %v161 = vsel %vm160, %v134, 0.0
    %v162 = vadd.f32 %v132, %v161
    %163 = vadd.xlane.f32.xlu0 %v162
    %v164 = vpop.xlane.xlu0 %163
    %v165 = vsel %vm160, %v138, 0.0
    %v166 = vadd.f32 %v136, %v165
    %167 = vadd.xlane.f32.xlu0 %v166
    %v168 = vpop.xlane.xlu0 %167
    %v169 = vsel %vm160, %v144, 0.0
    %v170 = vadd.f32 %v142, %v169
    %171 = vadd.xlane.f32.xlu0 %v170
    %v172 = vpop.xlane.xlu0 %171
    %v173 = vsel %vm160, %v148, 0.0
    %v174 = vadd.f32 %v146, %v173
    %175 = vadd.xlane.f32.xlu0 %v174
    %v176 = vpop.xlane.xlu0 %175
    %v177 = vsel %vm160, %v154, 0.0
    %v178 = vadd.f32 %v152, %v177
    %179 = vadd.xlane.f32.xlu0 %v178
    %v180 = vpop.xlane.xlu0 %179
    %v181 = vsel %vm160, %v158, 0.0
    %v182 = vadd.f32 %v156, %v181
    %183 = vadd.xlane.f32.xlu0 %v182
    %v184 = vpop.xlane.xlu0 %183
    %v185 = vmul.f32 %v132, %v132
    %v186 = vmul.f32 %v134, %v134
    %v187 = vmul.f32 %v136, %v136
    %v188 = vmul.f32 %v138, %v138
    %v189 = vmul.f32 %v142, %v142
    %v190 = vmul.f32 %v144, %v144
    %v191 = vmul.f32 %v146, %v146
    %v192 = vmul.f32 %v148, %v148
    %v193 = vmul.f32 %v152, %v152
    %v194 = vmul.f32 %v154, %v154
    %v195 = vmul.f32 %v156, %v156
    %v196 = vmul.f32 %v158, %v158
    %v197 = vsel %vm160, %v186, 0.0
    %v198 = vadd.f32 %v185, %v197
    %199 = vadd.xlane.f32.xlu0 %v198
    %v200 = vpop.xlane.xlu0 %199
    %v201 = vsel %vm160, %v188, 0.0
    %v202 = vadd.f32 %v187, %v201
    %203 = vadd.xlane.f32.xlu0 %v202
    %v204 = vpop.xlane.xlu0 %203
    %v205 = vsel %vm160, %v190, 0.0
    %v206 = vadd.f32 %v189, %v205
    %207 = vadd.xlane.f32.xlu0 %v206
    %v208 = vpop.xlane.xlu0 %207
    %v209 = vsel %vm160, %v192, 0.0
    %v210 = vadd.f32 %v191, %v209
    %211 = vadd.xlane.f32.xlu0 %v210
    %v212 = vpop.xlane.xlu0 %211
    %v213 = vsel %vm160, %v194, 0.0
    %v214 = vadd.f32 %v193, %v213
    %215 = vadd.xlane.f32.xlu0 %v214
    %v216 = vpop.xlane.xlu0 %215
    %v217 = vsel %vm160, %v196, 0.0
    %v218 = vadd.f32 %v195, %v217
    %219 = vadd.xlane.f32.xlu0 %v218
    %v220 = vpop.xlane.xlu0 %219
    %v221 = vmul.f32 %v164, 0.0051020407
    %v222 = vmul.f32 %v168, 0.0051020407
    %v223 = vmul.f32 %v172, 0.0051020407
    %v224 = vmul.f32 %v176, 0.0051020407
    %v225 = vmul.f32 %v180, 0.0051020407
    %v226 = vmul.f32 %v184, 0.0051020407
    %v227 = vmul.f32 %v200, 0.0051020407
    %v228 = vmul.f32 %v204, 0.0051020407
    %v229 = vmul.f32 %v208, 0.0051020407
    %v230 = vmul.f32 %v212, 0.0051020407
    %v231 = vmul.f32 %v216, 0.0051020407
    %v232 = vmul.f32 %v220, 0.0051020407
    %v233 = vmul.f32 %v221, %v221
    %v234 = vmul.f32 %v222, %v222
    %v235 = vmul.f32 %v223, %v223
    %v236 = vmul.f32 %v224, %v224
    %v237 = vmul.f32 %v225, %v225
    %v238 = vmul.f32 %v226, %v226
    %v239 = vsub.f32 %v227, %v233
    %v240 = vsub.f32 %v228, %v234
    %v241 = vsub.f32 %v229, %v235
    %v242 = vsub.f32 %v230, %v236
    %v243 = vsub.f32 %v231, %v237
    %v244 = vsub.f32 %v232, %v238
    %v245 = vld [vmem:[%s2] sm:$0xff]
    %v246 = vld [vmem:[%s2 + $0x8] sm:$0xff]
    %v247 = vld [vmem:[%s2 + $0x10] sm:$0xff]
    %v248 = vld [vmem:[%s2 + $0x18] sm:$0xff]
    %v249 = vld [vmem:[%s2 + $0x20] sm:$0xff]
    %v250 = vld [vmem:[%s2 + $0x28] sm:$0xff]
    %v251 = vadd.f32 %v239, 0.001
    %v252 = vadd.f32 %v240, 0.001
    %v253 = vadd.f32 %v241, 0.001
    %v254 = vadd.f32 %v242, 0.001
    %v255 = vadd.f32 %v243, 0.001
    %v256 = vadd.f32 %v244, 0.001
    %v257 = vrsqrt.pop %v251
    %v258 = vrsqrt.pop %v252
    %v259 = vrsqrt.pop %v253
    %v260 = vrsqrt.pop %v254
    %v261 = vrsqrt.pop %v255
    %v262 = vrsqrt.pop %v256
    %v263 = vmul.f32 %v245, %v257
    %v264 = vmul.f32 %v246, %v258
    %v265 = vmul.f32 %v247, %v259
    %v266 = vmul.f32 %v248, %v260
    %v267 = vmul.f32 %v249, %v261
    %v268 = vmul.f32 %v250, %v262
    %270 = vset.pattern.permute.xlu0 0
    %271 = vperm.xlu0 %270, %v263
    %v272 = vpop.permute.xlu0 %271
    %275 = vset.pattern.permute.xlu0 0
    %276 = vperm.xlu0 %275, %v264
    %v277 = vpop.permute.xlu0 %276
    %280 = vset.pattern.permute.xlu0 0
    %281 = vperm.xlu0 %280, %v265
    %v282 = vpop.permute.xlu0 %281
    %285 = vset.pattern.permute.xlu0 0
    %286 = vperm.xlu0 %285, %v266
    %v287 = vpop.permute.xlu0 %286
    %290 = vset.pattern.permute.xlu0 0
    %291 = vperm.xlu0 %290, %v267
    %v292 = vpop.permute.xlu0 %291
    %295 = vset.pattern.permute.xlu0 0
    %296 = vperm.xlu0 %295, %v268
    %v297 = vpop.permute.xlu0 %296
    %v299 = vmul.f32 %v132, %v272
    %v300 = vmul.f32 %v134, %v272
    %v301 = vmul.f32 %v136, %v277
    %v302 = vmul.f32 %v138, %v277
    %v303 = vmul.f32 %v142, %v282
    %v304 = vmul.f32 %v144, %v282
    %v305 = vmul.f32 %v146, %v287
    %v306 = vmul.f32 %v148, %v287
    %v307 = vmul.f32 %v152, %v292
    %v308 = vmul.f32 %v154, %v292
    %v309 = vmul.f32 %v156, %v297
    %v310 = vmul.f32 %v158, %v297
    %v311 = vld [vmem:[%s3] sm:$0xff]
    %v312 = vld [vmem:[%s3 + $0x8] sm:$0xff]
    %v313 = vld [vmem:[%s3 + $0x10] sm:$0xff]
    %v314 = vld [vmem:[%s3 + $0x18] sm:$0xff]
    %v315 = vld [vmem:[%s3 + $0x20] sm:$0xff]
    %v316 = vld [vmem:[%s3 + $0x28] sm:$0xff]
    %v317 = vld [vmem:[%s3 + $0x30] sm:$0xff]
    %v318 = vld [vmem:[%s3 + $0x38] sm:$0xff]
    %v319 = vld [vmem:[%s3 + $0x40] sm:$0xff]
    %v320 = vld [vmem:[%s3 + $0x48] sm:$0xff]
    %v321 = vld [vmem:[%s3 + $0x50] sm:$0xff]
    %v322 = vld [vmem:[%s3 + $0x58] sm:$0xff]
    %v323 = vld [vmem:[%s3 + $0x60] sm:$0xff]
    %v324 = vld [vmem:[%s3 + $0x68] sm:$0xff]
    %v325 = vld [vmem:[%s3 + $0x70] sm:$0xff]
    %v326 = vld [vmem:[%s3 + $0x78] sm:$0xff]
    %v327 = vld [vmem:[%s3 + $0x80] sm:$0xff]
    %v328 = vld [vmem:[%s3 + $0x88] sm:$0xff]
    %v329 = vpack.c.bf16 %v312, %v311
    %v330 = vpack.c.bf16 %v314, %v313
    %v331 = vpack.c.bf16 %v316, %v315
    %v332 = vpack.c.bf16 %v318, %v317
    %v333 = vpack.c.bf16 %v320, %v319
    %v334 = vpack.c.bf16 %v322, %v321
    %v335 = vpack.c.bf16 %v324, %v323
    %v336 = vpack.c.bf16 %v326, %v325
    %v337 = vpack.c.bf16 %v328, %v327
    %v338 = vpack.c.bf16 %v301, %v299
    %v339 = vpack.c.bf16 %v302, %v300
    %v340 = vpack.c.bf16 %v305, %v303
    %v341 = vpack.c.bf16 %v306, %v304
    %v342 = vpack.c.bf16 %v309, %v307
    %v343 = vpack.c.bf16 %v310, %v308
    %vm344 = vcmask 392192
    %v346 = vsel %vm344, %v329, 0
    %v349 = vsel %vm344, %v330, 0
    %v352 = vsel %vm344, %v331, 0
    %v355 = vsel %vm344, %v332, 0
    %v358 = vsel %vm344, %v333, 0
    %v361 = vsel %vm344, %v334, 0
    %v364 = vsel %vm344, %v335, 0
    %v367 = vsel %vm344, %v336, 0
    %v370 = vsel %vm344, %v337, 0
    %372 = vmatprep.subr.bf16.mxu0 %v339
    %373 = vmatpush1.bf16.msra.mxu0 %v338
    %374 = vmatprep.subr.bf16.mxu0 %v341
    %375 = vmatpush1.bf16.msra.mxu0 %v340
    %376 = vmatprep.subr.bf16.mxu0 %v343
    %377 = vmatpush1.bf16.msra.mxu0 %v342
    %378 = vmatprep.subr.bf16.mxu0 0
    %379 = vmatpush1.bf16.msra.mxu0 0
    %380 = vmatprep.subr.bf16.mxu0 0
    %381 = vmatpush1.bf16.msra.mxu0 0
    %382 = vmatprep.subr.bf16.mxu0 0
    %383 = vmatpush1.bf16.msra.mxu0 0
    %384 = vmatprep.subr.bf16.mxu0 0
    %385 = vmatpush1.bf16.msra.mxu0 0
    %386 = vmatprep.subr.bf16.mxu0 0
    %387 = vmatpush1.bf16.msra.mxu0 0
    %388 = vmatprep.subr.bf16.mxu0 0
    %389 = vmatpush1.bf16.msra.mxu0 0
    %390 = vmatprep.subr.bf16.mxu0 0
    %391 = vmatpush1.bf16.msra.mxu0 0
    %392 = vmatprep.subr.bf16.mxu0 0
    %393 = vmatpush1.bf16.msra.mxu0 0
    %394 = vmatprep.subr.bf16.mxu0 0
    %395 = vmatpush1.bf16.msra.mxu0 0
    %396 = vmatprep.subr.bf16.mxu0 0
    %397 = vmatpush1.bf16.msra.mxu0 0
    %398 = vmatprep.subr.bf16.mxu0 0
    %399 = vmatpush1.bf16.msra.mxu0 0
    %400 = vmatprep.subr.bf16.mxu0 0
    %401 = vmatpush1.bf16.msra.mxu0 0
    %402 = vmatprep.subr.bf16.mxu0 0
    %403 = vmatpush1.bf16.msra.mxu0 0
    %404 = vmatprep.mubr.bf16.mxu0 0
    %405 = vmatmul.mubr.bf16.gmra.mrb[0].mxu0 %v346
    %v406 = vpop.f32.mrb[0].mxu0
    %v407 = vadd.f32 0.0, %v406
    %v408 = vpop.f32.mrb[0].mxu0
    %v409 = vadd.f32 0.0, %v408
    %v410 = vpop.f32.mrb[0].mxu0
    %v411 = vadd.f32 0.0, %v410
    %v412 = vpop.f32.mrb[0].mxu0
    %v413 = vadd.f32 0.0, %v412
    %414 = vmatprep.mubr.bf16.mxu0 0
    %415 = vmatmul.mubr.bf16.gmra.mrb[0].mxu0 %v349
    %v416 = vpop.f32.mrb[0].mxu0
    %v417 = vadd.f32 0.0, %v416
    %v418 = vpop.f32.mrb[0].mxu0
    %v419 = vadd.f32 0.0, %v418
    %v420 = vpop.f32.mrb[0].mxu0
    %v421 = vadd.f32 0.0, %v420
    %v422 = vpop.f32.mrb[0].mxu0
    %v423 = vadd.f32 0.0, %v422
    %424 = vmatprep.mubr.bf16.mxu0 0
    %425 = vmatmul.mubr.bf16.gmra.mrb[0].mxu0 %v352
    %v426 = vpop.f32.mrb[0].mxu0
    %v427 = vadd.f32 0.0, %v426
    %v428 = vpop.f32.mrb[0].mxu0
    %v429 = vadd.f32 0.0, %v428
    %v430 = vpop.f32.mrb[0].mxu0
    %v431 = vadd.f32 0.0, %v430
    %v432 = vpop.f32.mrb[0].mxu0
    %v433 = vadd.f32 0.0, %v432
    %434 = vmatprep.mubr.bf16.mxu0 0
    %435 = vmatmul.mubr.bf16.gmra.mrb[0].mxu0 %v355
    %v436 = vpop.f32.mrb[0].mxu0
    %v437 = vadd.f32 0.0, %v436
    %v438 = vpop.f32.mrb[0].mxu0
    %v439 = vadd.f32 0.0, %v438
    %v440 = vpop.f32.mrb[0].mxu0
    %v441 = vadd.f32 0.0, %v440
    %v442 = vpop.f32.mrb[0].mxu0
    %v443 = vadd.f32 0.0, %v442
    %444 = vmatprep.mubr.bf16.mxu0 0
    %445 = vmatmul.mubr.bf16.gmra.mrb[0].mxu0 %v358
    %v446 = vpop.f32.mrb[0].mxu0
    %v447 = vadd.f32 0.0, %v446
    %v448 = vpop.f32.mrb[0].mxu0
    %v449 = vadd.f32 0.0, %v448
    %v450 = vpop.f32.mrb[0].mxu0
    %v451 = vadd.f32 0.0, %v450
    %v452 = vpop.f32.mrb[0].mxu0
    %v453 = vadd.f32 0.0, %v452
    %454 = vmatprep.mubr.bf16.mxu0 0
    %455 = vmatmul.mubr.bf16.gmra.mrb[0].mxu0 %v361
    %v456 = vpop.f32.mrb[0].mxu0
    %v457 = vadd.f32 0.0, %v456
    %v458 = vpop.f32.mrb[0].mxu0
    %v459 = vadd.f32 0.0, %v458
    %v460 = vpop.f32.mrb[0].mxu0
    %v461 = vadd.f32 0.0, %v460
    %v462 = vpop.f32.mrb[0].mxu0
    %v463 = vadd.f32 0.0, %v462
    %464 = vmatprep.mubr.bf16.mxu0 0
    %465 = vmatmul.mubr.bf16.gmra.mrb[0].mxu0 %v364
    %v466 = vpop.f32.mrb[0].mxu0
    %v467 = vadd.f32 0.0, %v466
    %v468 = vpop.f32.mrb[0].mxu0
    %v469 = vadd.f32 0.0, %v468
    %v470 = vpop.f32.mrb[0].mxu0
    %v471 = vadd.f32 0.0, %v470
    %v472 = vpop.f32.mrb[0].mxu0
    %v473 = vadd.f32 0.0, %v472
    %474 = vmatprep.mubr.bf16.mxu0 0
    %475 = vmatmul.mubr.bf16.gmra.mrb[0].mxu0 %v367
    %v476 = vpop.f32.mrb[0].mxu0
    %v477 = vadd.f32 0.0, %v476
    %v478 = vpop.f32.mrb[0].mxu0
    %v479 = vadd.f32 0.0, %v478
    %v480 = vpop.f32.mrb[0].mxu0
    %v481 = vadd.f32 0.0, %v480
    %v482 = vpop.f32.mrb[0].mxu0
    %v483 = vadd.f32 0.0, %v482
    %484 = vmatprep.mubr.bf16.mxu0 0
    %485 = vmatmul.mubr.bf16.gmra.mrb[0].mxu0 %v370
    %v486 = vpop.f32.mrb[0].mxu0
    %v487 = vadd.f32 0.0, %v486
    %v488 = vpop.f32.mrb[0].mxu0
    %v489 = vadd.f32 0.0, %v488
    %v490 = vpop.f32.mrb[0].mxu0
    %v491 = vadd.f32 0.0, %v490
    %v492 = vpop.f32.mrb[0].mxu0
    %v493 = vadd.f32 0.0, %v492
    %494 = vdwg.mxu0
    %v495 = vsel %vm160, %v409, 0.0
    %v496 = vadd.f32 %v407, %v495
    %497 = vadd.xlane.f32.xlu0 %v496
    %v498 = vpop.xlane.xlu0 %497
    %v499 = vsel %vm160, %v413, 0.0
    %v500 = vadd.f32 %v411, %v499
    %501 = vadd.xlane.f32.xlu0 %v500
    %v502 = vpop.xlane.xlu0 %501
    %v503 = vsel %vm160, %v419, 0.0
    %v504 = vadd.f32 %v417, %v503
    %505 = vadd.xlane.f32.xlu0 %v504
    %v506 = vpop.xlane.xlu0 %505
    %v507 = vsel %vm160, %v423, 0.0
    %v508 = vadd.f32 %v421, %v507
    %509 = vadd.xlane.f32.xlu0 %v508
    %v510 = vpop.xlane.xlu0 %509
    %v511 = vsel %vm160, %v429, 0.0
    %v512 = vadd.f32 %v427, %v511
    %513 = vadd.xlane.f32.xlu0 %v512
    %v514 = vpop.xlane.xlu0 %513
    %v515 = vsel %vm160, %v433, 0.0
    %v516 = vadd.f32 %v431, %v515
    %517 = vadd.xlane.f32.xlu0 %v516
    %v518 = vpop.xlane.xlu0 %517
    %v519 = vsel %vm160, %v439, 0.0
    %v520 = vadd.f32 %v437, %v519
    %521 = vadd.xlane.f32.xlu0 %v520
    %v522 = vpop.xlane.xlu0 %521
    %v523 = vsel %vm160, %v443, 0.0
    %v524 = vadd.f32 %v441, %v523
    %525 = vadd.xlane.f32.xlu0 %v524
    %v526 = vpop.xlane.xlu0 %525
    %v527 = vsel %vm160, %v449, 0.0
    %v528 = vadd.f32 %v447, %v527
    %529 = vadd.xlane.f32.xlu0 %v528
    %v530 = vpop.xlane.xlu0 %529
    %v531 = vsel %vm160, %v453, 0.0
    %v532 = vadd.f32 %v451, %v531
    %533 = vadd.xlane.f32.xlu0 %v532
    %v534 = vpop.xlane.xlu0 %533
    %v535 = vsel %vm160, %v459, 0.0
    %v536 = vadd.f32 %v457, %v535
    %537 = vadd.xlane.f32.xlu0 %v536
    %v538 = vpop.xlane.xlu0 %537
    %v539 = vsel %vm160, %v463, 0.0
    %v540 = vadd.f32 %v461, %v539
    %541 = vadd.xlane.f32.xlu0 %v540
    %v542 = vpop.xlane.xlu0 %541
    %v543 = vsel %vm160, %v469, 0.0
    %v544 = vadd.f32 %v467, %v543
    %545 = vadd.xlane.f32.xlu0 %v544
    %v546 = vpop.xlane.xlu0 %545
    %v547 = vsel %vm160, %v473, 0.0
    %v548 = vadd.f32 %v471, %v547
    %549 = vadd.xlane.f32.xlu0 %v548
    %v550 = vpop.xlane.xlu0 %549
    %v551 = vsel %vm160, %v479, 0.0
    %v552 = vadd.f32 %v477, %v551
    %553 = vadd.xlane.f32.xlu0 %v552
    %v554 = vpop.xlane.xlu0 %553
    %v555 = vsel %vm160, %v483, 0.0
    %v556 = vadd.f32 %v481, %v555
    %557 = vadd.xlane.f32.xlu0 %v556
    %v558 = vpop.xlane.xlu0 %557
    %v559 = vsel %vm160, %v489, 0.0
    %v560 = vadd.f32 %v487, %v559
    %561 = vadd.xlane.f32.xlu0 %v560
    %v562 = vpop.xlane.xlu0 %561
    %v563 = vsel %vm160, %v493, 0.0
    %v564 = vadd.f32 %v491, %v563
    %565 = vadd.xlane.f32.xlu0 %v564
    %v566 = vpop.xlane.xlu0 %565
    %v567 = vmul.f32 %v407, %v407
    %v568 = vmul.f32 %v409, %v409
    %v569 = vmul.f32 %v411, %v411
    %v570 = vmul.f32 %v413, %v413
    %v571 = vmul.f32 %v417, %v417
    %v572 = vmul.f32 %v419, %v419
    %v573 = vmul.f32 %v421, %v421
    %v574 = vmul.f32 %v423, %v423
    %v575 = vmul.f32 %v427, %v427
    %v576 = vmul.f32 %v429, %v429
    %v577 = vmul.f32 %v431, %v431
    %v578 = vmul.f32 %v433, %v433
    %v579 = vmul.f32 %v437, %v437
    %v580 = vmul.f32 %v439, %v439
    %v581 = vmul.f32 %v441, %v441
    %v582 = vmul.f32 %v443, %v443
    %v583 = vmul.f32 %v447, %v447
    %v584 = vmul.f32 %v449, %v449
    %v585 = vmul.f32 %v451, %v451
    %v586 = vmul.f32 %v453, %v453
    %v587 = vmul.f32 %v457, %v457
    %v588 = vmul.f32 %v459, %v459
    %v589 = vmul.f32 %v461, %v461
    %v590 = vmul.f32 %v463, %v463
    %v591 = vmul.f32 %v467, %v467
    %v592 = vmul.f32 %v469, %v469
    %v593 = vmul.f32 %v471, %v471
    %v594 = vmul.f32 %v473, %v473
    %v595 = vmul.f32 %v477, %v477
    %v596 = vmul.f32 %v479, %v479
    %v597 = vmul.f32 %v481, %v481
    %v598 = vmul.f32 %v483, %v483
    %v599 = vmul.f32 %v487, %v487
    %v600 = vmul.f32 %v489, %v489
    %v601 = vmul.f32 %v491, %v491
    %v602 = vmul.f32 %v493, %v493
    %v603 = vsel %vm160, %v568, 0.0
    %v604 = vadd.f32 %v567, %v603
    %605 = vadd.xlane.f32.xlu0 %v604
    %v606 = vpop.xlane.xlu0 %605
    %v607 = vsel %vm160, %v570, 0.0
    %v608 = vadd.f32 %v569, %v607
    %609 = vadd.xlane.f32.xlu0 %v608
    %v610 = vpop.xlane.xlu0 %609
    %v611 = vsel %vm160, %v572, 0.0
    %v612 = vadd.f32 %v571, %v611
    %613 = vadd.xlane.f32.xlu0 %v612
    %v614 = vpop.xlane.xlu0 %613
    %v615 = vsel %vm160, %v574, 0.0
    %v616 = vadd.f32 %v573, %v615
    %617 = vadd.xlane.f32.xlu0 %v616
    %v618 = vpop.xlane.xlu0 %617
    %v619 = vsel %vm160, %v576, 0.0
    %v620 = vadd.f32 %v575, %v619
    %621 = vadd.xlane.f32.xlu0 %v620
    %v622 = vpop.xlane.xlu0 %621
    %v623 = vsel %vm160, %v578, 0.0
    %v624 = vadd.f32 %v577, %v623
    %625 = vadd.xlane.f32.xlu0 %v624
    %v626 = vpop.xlane.xlu0 %625
    %v627 = vsel %vm160, %v580, 0.0
    %v628 = vadd.f32 %v579, %v627
    %629 = vadd.xlane.f32.xlu0 %v628
    %v630 = vpop.xlane.xlu0 %629
    %v631 = vsel %vm160, %v582, 0.0
    %v632 = vadd.f32 %v581, %v631
    %633 = vadd.xlane.f32.xlu0 %v632
    %v634 = vpop.xlane.xlu0 %633
    %v635 = vsel %vm160, %v584, 0.0
    %v636 = vadd.f32 %v583, %v635
    %637 = vadd.xlane.f32.xlu0 %v636
    %v638 = vpop.xlane.xlu0 %637
    %v639 = vsel %vm160, %v586, 0.0
    %v640 = vadd.f32 %v585, %v639
    %641 = vadd.xlane.f32.xlu0 %v640
    %v642 = vpop.xlane.xlu0 %641
    %v643 = vsel %vm160, %v588, 0.0
    %v644 = vadd.f32 %v587, %v643
    %645 = vadd.xlane.f32.xlu0 %v644
    %v646 = vpop.xlane.xlu0 %645
    %v647 = vsel %vm160, %v590, 0.0
    %v648 = vadd.f32 %v589, %v647
    %649 = vadd.xlane.f32.xlu0 %v648
    %v650 = vpop.xlane.xlu0 %649
    %v651 = vsel %vm160, %v592, 0.0
    %v652 = vadd.f32 %v591, %v651
    %653 = vadd.xlane.f32.xlu0 %v652
    %v654 = vpop.xlane.xlu0 %653
    %v655 = vsel %vm160, %v594, 0.0
    %v656 = vadd.f32 %v593, %v655
    %657 = vadd.xlane.f32.xlu0 %v656
    %v658 = vpop.xlane.xlu0 %657
    %v659 = vsel %vm160, %v596, 0.0
    %v660 = vadd.f32 %v595, %v659
    %661 = vadd.xlane.f32.xlu0 %v660
    %v662 = vpop.xlane.xlu0 %661
    %v663 = vsel %vm160, %v598, 0.0
    %v664 = vadd.f32 %v597, %v663
    %665 = vadd.xlane.f32.xlu0 %v664
    %v666 = vpop.xlane.xlu0 %665
    %v667 = vsel %vm160, %v600, 0.0
    %v668 = vadd.f32 %v599, %v667
    %669 = vadd.xlane.f32.xlu0 %v668
    %v670 = vpop.xlane.xlu0 %669
    %v671 = vsel %vm160, %v602, 0.0
    %v672 = vadd.f32 %v601, %v671
    %673 = vadd.xlane.f32.xlu0 %v672
    %v674 = vpop.xlane.xlu0 %673
    %v675 = vmul.f32 %v498, 0.0051020407
    %v676 = vmul.f32 %v502, 0.0051020407
    %v677 = vmul.f32 %v506, 0.0051020407
    %v678 = vmul.f32 %v510, 0.0051020407
    %v679 = vmul.f32 %v514, 0.0051020407
    %v680 = vmul.f32 %v518, 0.0051020407
    %v681 = vmul.f32 %v522, 0.0051020407
    %v682 = vmul.f32 %v526, 0.0051020407
    %v683 = vmul.f32 %v530, 0.0051020407
    %v684 = vmul.f32 %v534, 0.0051020407
    %v685 = vmul.f32 %v538, 0.0051020407
    %v686 = vmul.f32 %v542, 0.0051020407
    %v687 = vmul.f32 %v546, 0.0051020407
    %v688 = vmul.f32 %v550, 0.0051020407
    %v689 = vmul.f32 %v554, 0.0051020407
    %v690 = vmul.f32 %v558, 0.0051020407
    %v691 = vmul.f32 %v562, 0.0051020407
    %v692 = vmul.f32 %v566, 0.0051020407
    %v693 = vmul.f32 %v606, 0.0051020407
    %v694 = vmul.f32 %v610, 0.0051020407
    %v695 = vmul.f32 %v614, 0.0051020407
    %v696 = vmul.f32 %v618, 0.0051020407
    %v697 = vmul.f32 %v622, 0.0051020407
    %v698 = vmul.f32 %v626, 0.0051020407
    %v699 = vmul.f32 %v630, 0.0051020407
    %v700 = vmul.f32 %v634, 0.0051020407
    %v701 = vmul.f32 %v638, 0.0051020407
    %v702 = vmul.f32 %v642, 0.0051020407
    %v703 = vmul.f32 %v646, 0.0051020407
    %v704 = vmul.f32 %v650, 0.0051020407
    %v705 = vmul.f32 %v654, 0.0051020407
    %v706 = vmul.f32 %v658, 0.0051020407
    %v707 = vmul.f32 %v662, 0.0051020407
    %v708 = vmul.f32 %v666, 0.0051020407
    %v709 = vmul.f32 %v670, 0.0051020407
    %v710 = vmul.f32 %v674, 0.0051020407
    %v711 = vmul.f32 %v675, %v675
    %v712 = vmul.f32 %v676, %v676
    %v713 = vmul.f32 %v677, %v677
    %v714 = vmul.f32 %v678, %v678
    %v715 = vmul.f32 %v679, %v679
    %v716 = vmul.f32 %v680, %v680
    %v717 = vmul.f32 %v681, %v681
    %v718 = vmul.f32 %v682, %v682
    %v719 = vmul.f32 %v683, %v683
    %v720 = vmul.f32 %v684, %v684
    %v721 = vmul.f32 %v685, %v685
    %v722 = vmul.f32 %v686, %v686
    %v723 = vmul.f32 %v687, %v687
    %v724 = vmul.f32 %v688, %v688
    %v725 = vmul.f32 %v689, %v689
    %v726 = vmul.f32 %v690, %v690
    %v727 = vmul.f32 %v691, %v691
    %v728 = vmul.f32 %v692, %v692
    %v729 = vsub.f32 %v693, %v711
    %v730 = vsub.f32 %v694, %v712
    %v731 = vsub.f32 %v695, %v713
    %v732 = vsub.f32 %v696, %v714
    %v733 = vsub.f32 %v697, %v715
    %v734 = vsub.f32 %v698, %v716
    %v735 = vsub.f32 %v699, %v717
    %v736 = vsub.f32 %v700, %v718
    %v737 = vsub.f32 %v701, %v719
    %v738 = vsub.f32 %v702, %v720
    %v739 = vsub.f32 %v703, %v721
    %v740 = vsub.f32 %v704, %v722
    %v741 = vsub.f32 %v705, %v723
    %v742 = vsub.f32 %v706, %v724
    %v743 = vsub.f32 %v707, %v725
    %v744 = vsub.f32 %v708, %v726
    %v745 = vsub.f32 %v709, %v727
    %v746 = vsub.f32 %v710, %v728
    %v747 = vld [vmem:[%s4] sm:$0xff]
    %v748 = vld [vmem:[%s4 + $0x8] sm:$0xff]
    %v749 = vld [vmem:[%s4 + $0x10] sm:$0xff]
    %v750 = vld [vmem:[%s4 + $0x18] sm:$0xff]
    %v751 = vld [vmem:[%s4 + $0x20] sm:$0xff]
    %v752 = vld [vmem:[%s4 + $0x28] sm:$0xff]
    %v753 = vld [vmem:[%s4 + $0x30] sm:$0xff]
    %v754 = vld [vmem:[%s4 + $0x38] sm:$0xff]
    %v755 = vld [vmem:[%s4 + $0x40] sm:$0xff]
    %v756 = vld [vmem:[%s4 + $0x48] sm:$0xff]
    %v757 = vld [vmem:[%s4 + $0x50] sm:$0xff]
    %v758 = vld [vmem:[%s4 + $0x58] sm:$0xff]
    %v759 = vld [vmem:[%s4 + $0x60] sm:$0xff]
    %v760 = vld [vmem:[%s4 + $0x68] sm:$0xff]
    %v761 = vld [vmem:[%s4 + $0x70] sm:$0xff]
    %v762 = vld [vmem:[%s4 + $0x78] sm:$0xff]
    %v763 = vld [vmem:[%s4 + $0x80] sm:$0xff]
    %v764 = vld [vmem:[%s4 + $0x88] sm:$0xff]
    %v765 = vadd.f32 %v729, 0.001
    %v766 = vadd.f32 %v730, 0.001
    %v767 = vadd.f32 %v731, 0.001
    %v768 = vadd.f32 %v732, 0.001
    %v769 = vadd.f32 %v733, 0.001
    %v770 = vadd.f32 %v734, 0.001
    %v771 = vadd.f32 %v735, 0.001
    %v772 = vadd.f32 %v736, 0.001
    %v773 = vadd.f32 %v737, 0.001
    %v774 = vadd.f32 %v738, 0.001
    %v775 = vadd.f32 %v739, 0.001
    %v776 = vadd.f32 %v740, 0.001
    %v777 = vadd.f32 %v741, 0.001
    %v778 = vadd.f32 %v742, 0.001
    %v779 = vadd.f32 %v743, 0.001
    %v780 = vadd.f32 %v744, 0.001
    %v781 = vadd.f32 %v745, 0.001
    %v782 = vadd.f32 %v746, 0.001
    %v783 = vrsqrt.pop %v765
    %v784 = vrsqrt.pop %v766
    %v785 = vrsqrt.pop %v767
    %v786 = vrsqrt.pop %v768
    %v787 = vrsqrt.pop %v769
    %v788 = vrsqrt.pop %v770
    %v789 = vrsqrt.pop %v771
    %v790 = vrsqrt.pop %v772
    %v791 = vrsqrt.pop %v773
    %v792 = vrsqrt.pop %v774
    %v793 = vrsqrt.pop %v775
    %v794 = vrsqrt.pop %v776
    %v795 = vrsqrt.pop %v777
    %v796 = vrsqrt.pop %v778
    %v797 = vrsqrt.pop %v779
    %v798 = vrsqrt.pop %v780
    %v799 = vrsqrt.pop %v781
    %v800 = vrsqrt.pop %v782
    %v801 = vmul.f32 %v747, %v783
    %v802 = vmul.f32 %v748, %v784
    %v803 = vmul.f32 %v749, %v785
    %v804 = vmul.f32 %v750, %v786
    %v805 = vmul.f32 %v751, %v787
    %v806 = vmul.f32 %v752, %v788
    %v807 = vmul.f32 %v753, %v789
    %v808 = vmul.f32 %v754, %v790
    %v809 = vmul.f32 %v755, %v791
    %v810 = vmul.f32 %v756, %v792
    %v811 = vmul.f32 %v757, %v793
    %v812 = vmul.f32 %v758, %v794
    %v813 = vmul.f32 %v759, %v795
    %v814 = vmul.f32 %v760, %v796
    %v815 = vmul.f32 %v761, %v797
    %v816 = vmul.f32 %v762, %v798
    %v817 = vmul.f32 %v763, %v799
    %v818 = vmul.f32 %v764, %v800
    %v819 = vsub.f32 %v407, %v675
    %v820 = vsub.f32 %v409, %v675
    %v821 = vsub.f32 %v411, %v676
    %v822 = vsub.f32 %v413, %v676
    %v823 = vsub.f32 %v417, %v677
    %v824 = vsub.f32 %v419, %v677
    %v825 = vsub.f32 %v421, %v678
    %v826 = vsub.f32 %v423, %v678
    %v827 = vsub.f32 %v427, %v679
    %v828 = vsub.f32 %v429, %v679
    %v829 = vsub.f32 %v431, %v680
    %v830 = vsub.f32 %v433, %v680
    %v831 = vsub.f32 %v437, %v681
    %v832 = vsub.f32 %v439, %v681
    %v833 = vsub.f32 %v441, %v682
    %v834 = vsub.f32 %v443, %v682
    %v835 = vsub.f32 %v447, %v683
    %v836 = vsub.f32 %v449, %v683
    %v837 = vsub.f32 %v451, %v684
    %v838 = vsub.f32 %v453, %v684
    %v839 = vsub.f32 %v457, %v685
    %v840 = vsub.f32 %v459, %v685
    %v841 = vsub.f32 %v461, %v686
    %v842 = vsub.f32 %v463, %v686
    %v843 = vsub.f32 %v467, %v687
    %v844 = vsub.f32 %v469, %v687
    %v845 = vsub.f32 %v471, %v688
    %v846 = vsub.f32 %v473, %v688
    %v847 = vsub.f32 %v477, %v689
    %v848 = vsub.f32 %v479, %v689
    %v849 = vsub.f32 %v481, %v690
    %v850 = vsub.f32 %v483, %v690
    %v851 = vsub.f32 %v487, %v691
    %v852 = vsub.f32 %v489, %v691
    %v853 = vsub.f32 %v491, %v692
    %v854 = vsub.f32 %v493, %v692
    %856 = vset.pattern.permute.xlu0 0
    %857 = vperm.xlu0 %856, %v801
    %v858 = vpop.permute.xlu0 %857
    %861 = vset.pattern.permute.xlu0 0
    %862 = vperm.xlu0 %861, %v802
    %v863 = vpop.permute.xlu0 %862
    %866 = vset.pattern.permute.xlu0 0
    %867 = vperm.xlu0 %866, %v803
    %v868 = vpop.permute.xlu0 %867
    %871 = vset.pattern.permute.xlu0 0
    %872 = vperm.xlu0 %871, %v804
    %v873 = vpop.permute.xlu0 %872
    %876 = vset.pattern.permute.xlu0 0
    %877 = vperm.xlu0 %876, %v805
    %v878 = vpop.permute.xlu0 %877
    %881 = vset.pattern.permute.xlu0 0
    %882 = vperm.xlu0 %881, %v806
    %v883 = vpop.permute.xlu0 %882
    %886 = vset.pattern.permute.xlu0 0
    %887 = vperm.xlu0 %886, %v807
    %v888 = vpop.permute.xlu0 %887
    %891 = vset.pattern.permute.xlu0 0
    %892 = vperm.xlu0 %891, %v808
    %v893 = vpop.permute.xlu0 %892
    %896 = vset.pattern.permute.xlu0 0
    %897 = vperm.xlu0 %896, %v809
    %v898 = vpop.permute.xlu0 %897
    %901 = vset.pattern.permute.xlu0 0
    %902 = vperm.xlu0 %901, %v810
    %v903 = vpop.permute.xlu0 %902
    %906 = vset.pattern.permute.xlu0 0
    %907 = vperm.xlu0 %906, %v811
    %v908 = vpop.permute.xlu0 %907
    %911 = vset.pattern.permute.xlu0 0
    %912 = vperm.xlu0 %911, %v812
    %v913 = vpop.permute.xlu0 %912
    %916 = vset.pattern.permute.xlu0 0
    %917 = vperm.xlu0 %916, %v813
    %v918 = vpop.permute.xlu0 %917
    %921 = vset.pattern.permute.xlu0 0
    %922 = vperm.xlu0 %921, %v814
    %v923 = vpop.permute.xlu0 %922
    %926 = vset.pattern.permute.xlu0 0
    %927 = vperm.xlu0 %926, %v815
    %v928 = vpop.permute.xlu0 %927
    %931 = vset.pattern.permute.xlu0 0
    %932 = vperm.xlu0 %931, %v816
    %v933 = vpop.permute.xlu0 %932
    %936 = vset.pattern.permute.xlu0 0
    %937 = vperm.xlu0 %936, %v817
    %v938 = vpop.permute.xlu0 %937
    %941 = vset.pattern.permute.xlu0 0
    %942 = vperm.xlu0 %941, %v818
    %v943 = vpop.permute.xlu0 %942
    %v945 = vmul.f32 %v819, %v858
    %v946 = vmul.f32 %v820, %v858
    %v947 = vmul.f32 %v821, %v863
    %v948 = vmul.f32 %v822, %v863
    %v949 = vmul.f32 %v823, %v868
    %v950 = vmul.f32 %v824, %v868
    %v951 = vmul.f32 %v825, %v873
    %v952 = vmul.f32 %v826, %v873
    %v953 = vmul.f32 %v827, %v878
    %v954 = vmul.f32 %v828, %v878
    %v955 = vmul.f32 %v829, %v883
    %v956 = vmul.f32 %v830, %v883
    %v957 = vmul.f32 %v831, %v888
    %v958 = vmul.f32 %v832, %v888
    %v959 = vmul.f32 %v833, %v893
    %v960 = vmul.f32 %v834, %v893
    %v961 = vmul.f32 %v835, %v898
    %v962 = vmul.f32 %v836, %v898
    %v963 = vmul.f32 %v837, %v903
    %v964 = vmul.f32 %v838, %v903
    %v965 = vmul.f32 %v839, %v908
    %v966 = vmul.f32 %v840, %v908
    %v967 = vmul.f32 %v841, %v913
    %v968 = vmul.f32 %v842, %v913
    %v969 = vmul.f32 %v843, %v918
    %v970 = vmul.f32 %v844, %v918
    %v971 = vmul.f32 %v845, %v923
    %v972 = vmul.f32 %v846, %v923
    %v973 = vmul.f32 %v847, %v928
    %v974 = vmul.f32 %v848, %v928
    %v975 = vmul.f32 %v849, %v933
    %v976 = vmul.f32 %v850, %v933
    %v977 = vmul.f32 %v851, %v938
    %v978 = vmul.f32 %v852, %v938
    %v979 = vmul.f32 %v853, %v943
    %v980 = vmul.f32 %v854, %v943
    %v981 = vld [vmem:[%s5] sm:$0xff]
    %v982 = vld [vmem:[%s5 + $0x8] sm:$0xff]
    %v983 = vld [vmem:[%s5 + $0x10] sm:$0xff]
    %v984 = vld [vmem:[%s5 + $0x18] sm:$0xff]
    %v985 = vld [vmem:[%s5 + $0x20] sm:$0xff]
    %v986 = vld [vmem:[%s5 + $0x28] sm:$0xff]
    %v987 = vld [vmem:[%s5 + $0x30] sm:$0xff]
    %v988 = vld [vmem:[%s5 + $0x38] sm:$0xff]
    %v989 = vld [vmem:[%s5 + $0x40] sm:$0xff]
    %v990 = vld [vmem:[%s5 + $0x48] sm:$0xff]
    %v991 = vld [vmem:[%s5 + $0x50] sm:$0xff]
    %v992 = vld [vmem:[%s5 + $0x58] sm:$0xff]
    %v993 = vld [vmem:[%s5 + $0x60] sm:$0xff]
    %v994 = vld [vmem:[%s5 + $0x68] sm:$0xff]
    %v995 = vld [vmem:[%s5 + $0x70] sm:$0xff]
    %v996 = vld [vmem:[%s5 + $0x78] sm:$0xff]
    %v997 = vld [vmem:[%s5 + $0x80] sm:$0xff]
    %v998 = vld [vmem:[%s5 + $0x88] sm:$0xff]
    %1000 = vset.pattern.permute.xlu0 0
    %1001 = vperm.xlu0 %1000, %v981
    %v1002 = vpop.permute.xlu0 %1001
    %1005 = vset.pattern.permute.xlu0 0
    %1006 = vperm.xlu0 %1005, %v982
    %v1007 = vpop.permute.xlu0 %1006
    %1010 = vset.pattern.permute.xlu0 0
    %1011 = vperm.xlu0 %1010, %v983
    %v1012 = vpop.permute.xlu0 %1011
    %1015 = vset.pattern.permute.xlu0 0
    %1016 = vperm.xlu0 %1015, %v984
    %v1017 = vpop.permute.xlu0 %1016
    %1020 = vset.pattern.permute.xlu0 0
    %1021 = vperm.xlu0 %1020, %v985
    %v1022 = vpop.permute.xlu0 %1021
    %1025 = vset.pattern.permute.xlu0 0
    %1026 = vperm.xlu0 %1025, %v986
    %v1027 = vpop.permute.xlu0 %1026
    %1030 = vset.pattern.permute.xlu0 0
    %1031 = vperm.xlu0 %1030, %v987
    %v1032 = vpop.permute.xlu0 %1031
    %1035 = vset.pattern.permute.xlu0 0
    %1036 = vperm.xlu0 %1035, %v988
    %v1037 = vpop.permute.xlu0 %1036
    %1040 = vset.pattern.permute.xlu0 0
    %1041 = vperm.xlu0 %1040, %v989
    %v1042 = vpop.permute.xlu0 %1041
    %1045 = vset.pattern.permute.xlu0 0
    %1046 = vperm.xlu0 %1045, %v990
    %v1047 = vpop.permute.xlu0 %1046
    %1050 = vset.pattern.permute.xlu0 0
    %1051 = vperm.xlu0 %1050, %v991
    %v1052 = vpop.permute.xlu0 %1051
    %1055 = vset.pattern.permute.xlu0 0
    %1056 = vperm.xlu0 %1055, %v992
    %v1057 = vpop.permute.xlu0 %1056
    %1060 = vset.pattern.permute.xlu0 0
    %1061 = vperm.xlu0 %1060, %v993
    %v1062 = vpop.permute.xlu0 %1061
    %1065 = vset.pattern.permute.xlu0 0
    %1066 = vperm.xlu0 %1065, %v994
    %v1067 = vpop.permute.xlu0 %1066
    %1070 = vset.pattern.permute.xlu0 0
    %1071 = vperm.xlu0 %1070, %v995
    %v1072 = vpop.permute.xlu0 %1071
    %1075 = vset.pattern.permute.xlu0 0
    %1076 = vperm.xlu0 %1075, %v996
    %v1077 = vpop.permute.xlu0 %1076
    %1080 = vset.pattern.permute.xlu0 0
    %1081 = vperm.xlu0 %1080, %v997
    %v1082 = vpop.permute.xlu0 %1081
    %1085 = vset.pattern.permute.xlu0 0
    %1086 = vperm.xlu0 %1085, %v998
    %v1087 = vpop.permute.xlu0 %1086
    %v1089 = vadd.f32 %v945, %v1002
    %v1090 = vadd.f32 %v946, %v1002
    %v1091 = vadd.f32 %v947, %v1007
    %v1092 = vadd.f32 %v948, %v1007
    %v1093 = vadd.f32 %v949, %v1012
    %v1094 = vadd.f32 %v950, %v1012
    %v1095 = vadd.f32 %v951, %v1017
    %v1096 = vadd.f32 %v952, %v1017
    %v1097 = vadd.f32 %v953, %v1022
    %v1098 = vadd.f32 %v954, %v1022
    %v1099 = vadd.f32 %v955, %v1027
    %v1100 = vadd.f32 %v956, %v1027
    %v1101 = vadd.f32 %v957, %v1032
    %v1102 = vadd.f32 %v958, %v1032
    %v1103 = vadd.f32 %v959, %v1037
    %v1104 = vadd.f32 %v960, %v1037
    %v1105 = vadd.f32 %v961, %v1042
    %v1106 = vadd.f32 %v962, %v1042
    %v1107 = vadd.f32 %v963, %v1047
    %v1108 = vadd.f32 %v964, %v1047
    %v1109 = vadd.f32 %v965, %v1052
    %v1110 = vadd.f32 %v966, %v1052
    %v1111 = vadd.f32 %v967, %v1057
    %v1112 = vadd.f32 %v968, %v1057
    %v1113 = vadd.f32 %v969, %v1062
    %v1114 = vadd.f32 %v970, %v1062
    %v1115 = vadd.f32 %v971, %v1067
    %v1116 = vadd.f32 %v972, %v1067
    %v1117 = vadd.f32 %v973, %v1072
    %v1118 = vadd.f32 %v974, %v1072
    %v1119 = vadd.f32 %v975, %v1077
    %v1120 = vadd.f32 %v976, %v1077
    %v1121 = vadd.f32 %v977, %v1082
    %v1122 = vadd.f32 %v978, %v1082
    %v1123 = vadd.f32 %v979, %v1087
    %v1124 = vadd.f32 %v980, %v1087
    %1125 = vst [vmem:[#allocation2] sm:$0xff] %v1089
    %1126 = vst.msk [vmem:[#allocation2 + $0x8] sm:$0xff] %vm160, %v1090
    %1127 = vst [vmem:[#allocation2 + $0x10] sm:$0xff] %v1091
    %1128 = vst.msk [vmem:[#allocation2 + $0x18] sm:$0xff] %vm160, %v1092
    %1129 = vst [vmem:[#allocation2 + $0x20] sm:$0xff] %v1093
    %1130 = vst.msk [vmem:[#allocation2 + $0x28] sm:$0xff] %vm160, %v1094
    %1131 = vst [vmem:[#allocation2 + $0x30] sm:$0xff] %v1095
    %1132 = vst.msk [vmem:[#allocation2 + $0x38] sm:$0xff] %vm160, %v1096
    %1133 = vst [vmem:[#allocation2 + $0x40] sm:$0xff] %v1097
    %1134 = vst.msk [vmem:[#allocation2 + $0x48] sm:$0xff] %vm160, %v1098
    %1135 = vst [vmem:[#allocation2 + $0x50] sm:$0xff] %v1099
    %1136 = vst.msk [vmem:[#allocation2 + $0x58] sm:$0xff] %vm160, %v1100
    %1137 = vst [vmem:[#allocation2 + $0x60] sm:$0xff] %v1101
    %1138 = vst.msk [vmem:[#allocation2 + $0x68] sm:$0xff] %vm160, %v1102
    %1139 = vst [vmem:[#allocation2 + $0x70] sm:$0xff] %v1103
    %1140 = vst.msk [vmem:[#allocation2 + $0x78] sm:$0xff] %vm160, %v1104
    %1141 = vst [vmem:[#allocation2 + $0x80] sm:$0xff] %v1105
    %1142 = vst.msk [vmem:[#allocation2 + $0x88] sm:$0xff] %vm160, %v1106
    %1143 = vst [vmem:[#allocation2 + $0x90] sm:$0xff] %v1107
    %1144 = vst.msk [vmem:[#allocation2 + $0x98] sm:$0xff] %vm160, %v1108
    %1145 = vst [vmem:[#allocation2 + $0xa0] sm:$0xff] %v1109
    %1146 = vst.msk [vmem:[#allocation2 + $0xa8] sm:$0xff] %vm160, %v1110
    %1147 = vst [vmem:[#allocation2 + $0xb0] sm:$0xff] %v1111
    %1148 = vst.msk [vmem:[#allocation2 + $0xb8] sm:$0xff] %vm160, %v1112
    %1149 = vst [vmem:[#allocation2 + $0xc0] sm:$0xff] %v1113
    %1150 = vst.msk [vmem:[#allocation2 + $0xc8] sm:$0xff] %vm160, %v1114
    %1151 = vst [vmem:[#allocation2 + $0xd0] sm:$0xff] %v1115
    %1152 = vst.msk [vmem:[#allocation2 + $0xd8] sm:$0xff] %vm160, %v1116
    %1153 = vst [vmem:[#allocation2 + $0xe0] sm:$0xff] %v1117
    %1154 = vst.msk [vmem:[#allocation2 + $0xe8] sm:$0xff] %vm160, %v1118
    %1155 = vst [vmem:[#allocation2 + $0xf0] sm:$0xff] %v1119
    %1156 = vst.msk [vmem:[#allocation2 + $0xf8] sm:$0xff] %vm160, %v1120
    %1157 = vst [vmem:[#allocation2 + $0x100] sm:$0xff] %v1121
    %1158 = vst.msk [vmem:[#allocation2 + $0x108] sm:$0xff] %vm160, %v1122
    %1159 = vst [vmem:[#allocation2 + $0x110] sm:$0xff] %v1123
    %1160 = vst.msk [vmem:[#allocation2 + $0x118] sm:$0xff] %vm160, %v1124
    // Predicated region
    $region26: #{tpu_custom_call.1} parent=1 // pred_check
      _
    $region27: #{tpu_custom_call.1} parent=1 // pred_check_branch
      %1162 = sbr.rel (0) target = $region29
    $region28: #{tpu_custom_call.1} parent=1 // pred_region
      %s1164 = ssub.s32 4608, 4608
      %1165 = vsyncadd [#allocation3], %s1164
      %s1166 = sshll.u32 [#allocation2], 4
      %s1167 = int_to_ptr.vmem [resolvable:$true] %s1166
      %1172 = dma.vmem_to_hbm [thread:$0]  %s1167, 4608, %s6, [#allocation3], 256, 256, 16
    $region29: #{tpu_custom_call.1} parent=1 // pred_fallthru
      _
    // Predicated region
    $region30: #{tpu_custom_call.1} parent=1 // pred_check
      _
    $region31: #{tpu_custom_call.1} parent=1 // pred_check_branch
      %1174 = sbr.rel (0) target = $region33
    $region32: #{tpu_custom_call.1} parent=1 // pred_region
      %1175 = dma.done [#allocation3], 4608
    $region33: #{tpu_custom_call.1} parent=1 // pred_fallthru
      _
    %1176 = vsyncpa [#allocation3], 1

</llo_original>
